<compile_context>
chip_gen: v5e
topology: v5e:2x2
jax: 0.10.0
libtpu: 0.0.40
codegen_flags: <defaults>
</compile_context>

<pallas_src>
import numpy as np
import jax
import jax.numpy as jnp
from jax.experimental import pallas as pl
from jax.experimental.pallas import tpu as pltpu

POOL_SIZES = (1, 2, 3, 6)   # AdaptiveAvgPool2d(1), (2), (3), (6)
BN_EPS = 1e-5


# ----------------------------------------------------------------------------
# Host-side constants: exact adaptive-avg-pool / bilinear-upsample matrices.
# ----------------------------------------------------------------------------
def _adaptive_pool_matrix_1d(out_size, in_size):
    """Rows of averaging weights reproducing torch AdaptiveAvgPool semantics."""
    M = np.zeros((out_size, in_size), dtype=np.float32)
    for o in range(out_size):
        start = (o * in_size) // out_size
        end = -((-(o + 1) * in_size) // out_size)     # ceil((o+1)*in/out)
        M[o, start:end] = 1.0 / (end - start)
    return M


def _bilinear_upsample_matrix_1d(out_size, in_size):
    """align_corners=True bilinear interpolation weights (torch F.upsample)."""
    M = np.zeros((out_size, in_size), dtype=np.float32)
    for o in range(out_size):
        pos = 0.0 if (in_size == 1 or out_size == 1) else o * (in_size - 1) / (out_size - 1)
        lo = int(np.floor(pos))
        hi = min(lo + 1, in_size - 1)
        frac = pos - lo
        M[o, lo] += 1.0 - frac
        if hi != lo:
            M[o, hi] += frac
    return M


def build_branch_constants(H, W):
    """Per pyramid scale: P (s*s, H*W) pooling matrix, U (H*W, s*s) upsample matrix."""
    mats = {}
    for s in POOL_SIZES:
        Ph = _adaptive_pool_matrix_1d(s, H)
        Pw = _adaptive_pool_matrix_1d(s, W)
        Uh = _bilinear_upsample_matrix_1d(H, s)
        Uw = _bilinear_upsample_matrix_1d(W, s)
        P = np.kron(Ph, Pw)          # (s*s, H*W), row = iy*s+ix, col = y*W+x
        U = np.kron(Uh, Uw)          # (H*W, s*s)
        mats[s] = (jnp.asarray(P), jnp.asarray(U))
    return mats


def init_params(key, C, H, W):
    """Deterministic synthetic module parameters (conv weights + BN eval stats)."""
    Cout = C // 4
    mats = build_branch_constants(H, W)
    params = {}
    for i, s in enumerate(POOL_SIZES):
        k = jax.random.fold_in(key, i)
        kw, kg, kb, km, kv = jax.random.split(k, 5)
        # Conv2d(C, Cout, 1, bias=False) weight (Cout, C, 1, 1) -> stored as (C, Cout)
        Wc = 0.1 * jax.random.normal(kw, (C, Cout), dtype=jnp.float32)
        gamma = 1.0 + 0.1 * jax.random.normal(kg, (Cout,), dtype=jnp.float32)
        beta = 0.1 * jax.random.normal(kb, (Cout,), dtype=jnp.float32)
        r_mean = 0.05 * jax.random.normal(km, (Cout,), dtype=jnp.float32)
        r_var = 0.5 + jnp.abs(jax.random.normal(kv, (Cout,), dtype=jnp.float32))
        scale = gamma / jnp.sqrt(r_var + BN_EPS)
        bias = beta - r_mean * scale
        P, U = mats[s]
        params[s] = (P, U, Wc, scale.reshape(1, Cout), bias.reshape(1, Cout))
    return params


def fuse_params(params, C, batch_block=1):
    """Fuse the 4 branches into stacked, lane-dense kernel constants.

    Pooling is represented EXACTLY: P01_T holds 0/1 pool-membership (lossless in bf16)
    and the per-pool-cell 1/count normalisation is folded, in f32, into the branch mask
    that already multiplies the conv output column-wise.
    """
    Cout = C // 4
    C2 = 4 * Cout
    p01_rows, u_rows, w_rows, bias_list, invc_list = [], [], [], [], []
    for s in POOL_SIZES:
        P, U, Wc, scale, bias = params[s]
        Pn = np.asarray(P)
        P01 = (Pn > 0).astype(np.float32)                # 0/1 membership (exact in bf16)
        counts = P01.sum(axis=1)                         # pixels per pool cell
        p01_rows.append(P01)                             # (s*s, HW)
        invc_list.append((1.0 / counts).astype(np.float32))
        u_rows.append(np.asarray(U).T)                   # (s*s, HW)  U^T, lane-dense
        w_rows.append(np.asarray(Wc * scale).T)          # (Cout, C)  BN scale folded in
        bias_list.append(np.asarray(bias).reshape(-1))   # (Cout,)

    P01_T = np.concatenate(p01_rows, axis=0).T           # (HW, S_total)
    U_stack = np.concatenate(u_rows, axis=0)             # (S_total, HW)
    W_all = np.concatenate(w_rows, axis=0)               # (C2, C)
    S = int(P01_T.shape[1])                              # sum(s*s) = 50

    mask = np.zeros((C2, S), dtype=np.float32)           # block-diag * 1/count (f32, exact)
    biasm = np.zeros((C2, S), dtype=np.float32)          # BN bias on in-branch columns only
    off = 0
    for b, s in enumerate(POOL_SIZES):
        rows = slice(b * Cout, (b + 1) * Cout)
        cols = slice(off, off + s * s)
        mask[rows, cols] = invc_list[b][None, :]
        biasm[rows, cols] = bias_list[b][:, None]
        off += s * s

    NB = batch_block
    if NB > 1:
        # Block-diagonal conv weight fuses the per-batch 1x1 convs into ONE matmul.
        # Only intended for small problems (single-TC chips, tiny N): size grows as NB^2.
        W_k = np.kron(np.eye(NB, dtype=np.float32), W_all)
        mask_k = np.tile(mask, (NB, 1))
        biasm_k = np.tile(biasm, (NB, 1))
    else:
        W_k, mask_k, biasm_k = W_all, mask, biasm

    return dict(
        P01_T=jnp.asarray(P01_T, dtype=jnp.bfloat16),
        U=jnp.asarray(U_stack, dtype=jnp.bfloat16),
        W=jnp.asarray(W_k, dtype=jnp.bfloat16),
        mask=jnp.asarray(mask_k),
        biasm=jnp.asarray(biasm_k),
        S=S,
    )


# ----------------------------------------------------------------------------
# Fused single-call path (fits VMEM whole; ideal for small/medium sizes).
# ----------------------------------------------------------------------------
def pyramid_pooling_fused(x_nchw, params, *, include_x=True, batch_block=None):
    """Forward of PyramidPooling.

    include_x=True  -> module semantics: cat(x, feat1..feat4) along channels (2C out).
    include_x=False -> only the 4 branch features (C out): removes the verbatim f32/bf16
                       passthrough copy of x (~1/3 of kernel HBM traffic) for consumers
                       that can read x directly.
    batch_block     -> batch elements per grid step.  Default: whole batch in one step
                       (best on single-TC v5e/v6e at small N).  Use 1 for a per-batch
                       "parallel" grid that shards across v7x's two TensorCores.
    Output dtype follows x's dtype (pass bf16 x for bf16 I/O; f32 accumulation inside).
    """
    N, C, H, W = x_nchw.shape
    HW, Cout = H * W, C // 4
    C2 = 4 * Cout
    NB = N if batch_block is None else batch_block
    assert N % NB == 0
    CT = C + C2 if include_x else C2

    f = fuse_params(params, C, batch_block=NB)
    P01_T, W_k, mask_k, biasm_k, U_stack, S = f["P01_T"], f["W"], f["mask"], f["biasm"], f["U"], f["S"]

    # NCHW -> (N*C, HW): pure reshape, no transpose; HW maps to lanes.
    x2d = x_nchw.reshape(N * C, HW)
    out_dtype = x2d.dtype

    def kernel(x_ref, p_ref, w_ref, mask_ref, biasm_ref, u_ref, o_ref):
        x2 = x_ref[...]                                              # (NB*C, HW), input dtype
        # All 4 adaptive average pools: 0/1 membership matmul, f32 accumulation (sums).
        pooled = jnp.dot(x2.astype(jnp.bfloat16), p_ref[...],
                         preferred_element_type=jnp.float32)         # (NB*C, S)
        # All 4 1x1 convs (per-batch block-diagonal weight, BN scale pre-folded).
        conv = jnp.dot(w_ref[...], pooled.astype(jnp.bfloat16),
                       preferred_element_type=jnp.float32)           # (NB*C2, S)
        # mask = block-diag branch structure * exact 1/count pool normalisation (f32);
        # biasm = BN bias on in-branch columns.  Then ReLU.
        act = jnp.maximum(conv * mask_ref[...] + biasm_ref[...], 0.0)
        # All 4 bilinear upsamples (align_corners=True): one lane-dense matmul.
        feats = jnp.dot(act.astype(jnp.bfloat16), u_ref[...],
                        preferred_element_type=jnp.float32)          # (NB*C2, HW)
        # Fused channel concat [x, feat1..feat4]; static per-batch row slices (NB tiny).
        for n in range(NB):
            if include_x:
                o_ref[n * CT:n * CT + C, :] = x2[n * C:(n + 1) * C, :].astype(o_ref.dtype)
                o_ref[n * CT + C:(n + 1) * CT, :] = feats[n * C2:(n + 1) * C2, :].astype(o_ref.dtype)
            else:
                o_ref[n * CT:(n + 1) * CT, :] = feats[n * C2:(n + 1) * C2, :].astype(o_ref.dtype)

    flops = 2 * N * (C * HW * S + C2 * C * S + C2 * S * HW)
    const_bytes = sum(int(a.size) * a.dtype.itemsize for a in (P01_T, W_k, mask_k, biasm_k, U_stack))
    bytes_accessed = (int(x2d.size) * x2d.dtype.itemsize
                      + N * CT * HW * out_dtype.itemsize + const_bytes)

    out = pl.pallas_call(
        kernel,
        out_shape=jax.ShapeDtypeStruct((N * CT, HW), out_dtype),
        grid_spec=pltpu.PrefetchScalarGridSpec(
            num_scalar_prefetch=0,
            grid=(N // NB,),
            in_specs=[
                pl.BlockSpec((NB * C, HW), lambda b: (b, 0)),
                # NOTE: the 5 constants below never change across the grid; at
                # production C (~2048) single-buffer them (pipeline_mode=pl.Buffered(1)
                # or prime into scratch) to free VMEM for bigger blocks.
                pl.BlockSpec(P01_T.shape, lambda b: (0, 0)),
                pl.BlockSpec(W_k.shape, lambda b: (0, 0)),
                pl.BlockSpec(mask_k.shape, lambda b: (0, 0)),
                pl.BlockSpec(biasm_k.shape, lambda b: (0, 0)),
                pl.BlockSpec(U_stack.shape, lambda b: (0, 0)),
            ],
            out_specs=pl.BlockSpec((NB * CT, HW), lambda b: (b, 0)),
        ),
        compiler_params=pltpu.CompilerParams(
            dimension_semantics=("parallel",),         # batch-block axis -> both TCs on v7x
            vmem_limit_bytes=48 * 1024 * 1024),
        cost_estimate=pl.CostEstimate(flops=flops, transcendentals=0,
                                      bytes_accessed=bytes_accessed),
    )(x2d, P01_T, W_k, mask_k, biasm_k, U_stack)

    return out.reshape(N, CT, H, W)


# ----------------------------------------------------------------------------
# Production-scale path: HW tiled onto an inner grid axis (v7x 64 MiB VMEM safe).
# Outputs only the branch features (no x passthrough copy, per review).
# ----------------------------------------------------------------------------
def pyramid_pooling_tiled(x_nchw, params, *, hw_tile=512):
    """Two-pass tiled variant.

    Pass 1 streams (C, THW) tiles of x, accumulates the (exact 0/1) pooled sums in a
    VMEM f32 scratch and fuses the 1x1 conv + BN + ReLU into the last tile (pl.when).
    Pass 2 streams lane-dense (S, THW) tiles of the upsample matrix and writes
    lane-dense (C, THW) feature tiles.  hw_tile must be a multiple of 128; budget
    ~512 on v7x (64 MiB VMEM), 1024-2048 on v5e/v6e (128 MiB VMEM).
    """
    N, C, H, W = x_nchw.shape
    HW, Cout = H * W, C // 4
    C2 = 4 * Cout
    THW = min(hw_tile, HW)
    assert THW % 128 == 0 and HW % THW == 0, "HW tile must be lane-aligned and divide HW"
    T = HW // THW

    f = fuse_params(params, C, batch_block=1)
    P01_T, W_all, mask, biasm, U_stack, S = f["P01_T"], f["W"], f["mask"], f["biasm"], f["U"], f["S"]

    x2d = x_nchw.reshape(N * C, HW)
    out_dtype = x2d.dtype

    # --- Pass 1: pooled accumulation over HW tiles + fused conv/BN/ReLU at last tile.
    def pool_conv_kernel(x_ref, p_ref, w_ref, mask_ref, biasm_ref, act_ref, acc_ref):
        t = pl.program_id(1)

        @pl.when(t == 0)
        def _init():
            acc_ref[...] = jnp.zeros_like(acc_ref)

        acc_ref[...] += jnp.dot(x_ref[...].astype(jnp.bfloat16), p_ref[...],
                                preferred_element_type=jnp.float32)      # (C, S) partial sums

        @pl.when(t == pl.num_programs(1) - 1)
        def _finalize():
            conv = jnp.dot(w_ref[...], acc_ref[...].astype(jnp.bfloat16),
                           preferred_element_type=jnp.float32)           # (C2, S)
            act_ref[...] = jnp.maximum(conv * mask_ref[...] + biasm_ref[...], 0.0)

    act = pl.pallas_call(
        pool_conv_kernel,
        out_shape=jax.ShapeDtypeStruct((N * C2, S), jnp.float32),
        grid_spec=pltpu.PrefetchScalarGridSpec(
            num_scalar_prefetch=0,
            grid=(N, T),
            in_specs=[
                pl.BlockSpec((C, THW), lambda b, t: (b, t)),
                pl.BlockSpec((THW, S), lambda b, t: (t, 0)),
                pl.BlockSpec(W_all.shape, lambda b, t: (0, 0)),
                pl.BlockSpec(mask.shape, lambda b, t: (0, 0)),
                pl.BlockSpec(biasm.shape, lambda b, t: (0, 0)),
            ],
            out_specs=pl.BlockSpec((C2, S), lambda b, t: (b, 0)),
            scratch_shapes=[pltpu.VMEM((C, S), jnp.float32)]),
        compiler_params=pltpu.CompilerParams(
            dimension_semantics=("parallel", "arbitrary"),
            vmem_limit_bytes=48 * 1024 * 1024),
        cost_estimate=pl.CostEstimate(
            flops=2 * N * (C * HW * S + C2 * C * S), transcendentals=0,
            bytes_accessed=int(x2d.size) * x2d.dtype.itemsize + N * C2 * S * 4),
    )(x2d, P01_T, W_all, mask, biasm)

    # --- Pass 2: bilinear upsample of all 4 branches, lane-dense THW output tiles.
    def upsample_kernel(act_ref, u_ref, o_ref):
        o_ref[...] = jnp.dot(act_ref[...].astype(jnp.bfloat16), u_ref[...],
                             preferred_element_type=jnp.float32).astype(o_ref.dtype)

    feats = pl.pallas_call(
        upsample_kernel,
        out_shape=jax.ShapeDtypeStruct((N * C2, HW), out_dtype),
        grid_spec=pltpu.PrefetchScalarGridSpec(
            num_scalar_prefetch=0,
            grid=(N, T),
            in_specs=[
                pl.BlockSpec((C2, S), lambda b, t: (b, 0)),
                pl.BlockSpec((S, THW), lambda b, t: (0, t)),
            ],
            out_specs=pl.BlockSpec((C2, THW), lambda b, t: (b, t))),
        compiler_params=pltpu.CompilerParams(
            dimension_semantics=("parallel", "arbitrary"),
            vmem_limit_bytes=48 * 1024 * 1024),
        cost_estimate=pl.CostEstimate(
            flops=2 * N * C2 * S * HW, transcendentals=0,
            bytes_accessed=(N * C2 * S * 4 + int(U_stack.size) * 2
                            + N * C2 * HW * out_dtype.itemsize)),
    )(act, U_stack)

    return feats.reshape(N, C2, H, W)


# ----------------------------------------------------------------------------
# Pure-JAX reference (per-branch, f32, independent op path).
# ----------------------------------------------------------------------------
def pyramid_pooling_reference(x_nchw, params):
    N, C, H, W = x_nchw.shape
    xf = x_nchw.reshape(N, C, H * W).astype(jnp.float32)
    feats = []
    for s in POOL_SIZES:
        P, U, Wc, scale, bias = params[s]
        pooled = jnp.einsum('ph,nch->ncp', P, xf)                 # (N, C, s*s)
        conv = jnp.einsum('cd,ncp->ndp', Wc, pooled)              # (N, Cout, s*s)
        act = jnp.maximum(conv * scale.reshape(1, -1, 1) + bias.reshape(1, -1, 1), 0.0)
        feats.append(jnp.einsum('hp,ndp->ndh', U, act))           # (N, Cout, H*W)
    out = jnp.concatenate([xf] + feats, axis=1)
    return out.reshape(N, 2 * C, H, W)


if __name__ == "__main__":
    N, C, H, W = 2, 32, 16, 16        # in_channels=32 -> out_channels per branch = 8
    key = jax.random.PRNGKey(0)
    kx, kp = jax.random.split(key)
    x = jax.random.normal(kx, (N, C, H, W), dtype=jnp.float32)
    params = init_params(kp, C, H, W)

    ref = jax.block_until_ready(pyramid_pooling_reference(x, params))

    # 1) Fused kernel, exact module semantics (cat(x, feats)), f32 I/O, whole batch/step.
    out = jax.block_until_ready(pyramid_pooling_fused(x, params))
    assert out.shape == (N, 2 * C, H, W), out.shape
    np.testing.assert_allclose(np.asarray(out), np.asarray(ref), rtol=1e-2, atol=1e-2)

    # 2) bf16 I/O variant (halves HBM traffic; MXU accumulation stays f32).
    out_bf16 = jax.block_until_ready(pyramid_pooling_fused(x.astype(jnp.bfloat16), params))
    assert out_bf16.dtype == jnp.bfloat16
    np.testing.assert_allclose(np.asarray(out_bf16.astype(jnp.float32)), np.asarray(ref),
                               rtol=5e-2, atol=5e-2)

    # 3) Feats-only output (drops the x passthrough copy; downstream conv reads x directly).
    feats_only = jax.block_until_ready(pyramid_pooling_fused(x, params, include_x=False))
    np.testing.assert_allclose(np.asarray(feats_only), np.asarray(ref)[:, C:],
                               rtol=1e-2, atol=1e-2)

    # 4) Production-style HW-tiled two-pass path (small tile here to exercise the
    #    pooled-accumulator pipeline: 256-lane HW split into two 128-lane tiles).
    feats_tiled = jax.block_until_ready(pyramid_pooling_tiled(x, params, hw_tile=128))
    np.testing.assert_allclose(np.asarray(feats_tiled), np.asarray(ref)[:, C:],
                               rtol=1e-2, atol=1e-2)

    print("KERNEL_OK")
</pallas_src>

<mosaic_0001>
module attributes {stable_mosaic.version = 11 : i64} {
  func.func @kernel(%arg0: i32, %arg1: memref<64x256xf32, #tpu.memory_space<vmem>>, %arg2: memref<256x50xbf16, #tpu.memory_space<vmem>>, %arg3: memref<64x64xbf16, #tpu.memory_space<vmem>>, %arg4: memref<64x50xf32, #tpu.memory_space<vmem>>, %arg5: memref<64x50xf32, #tpu.memory_space<vmem>>, %arg6: memref<50x256xbf16, #tpu.memory_space<vmem>>, %arg7: memref<128x256xf32, #tpu.memory_space<vmem>>) attributes {dimension_semantics = [#tpu.dimension_semantics<parallel>], iteration_bounds = array<i64: 1>, scalar_prefetch = 0 : i64, scratch_operands = 0 : i64, tpu.core_type = #tpu.core_type<tc>, window_params = [{transform_indices = @transform_0, window_bounds = array<i64: 64, 256>}, {pipeline_mode = #tpu.pipeline_mode<synchronous>, transform_indices = @transform_1, window_bounds = array<i64: 256, 50>}, {pipeline_mode = #tpu.pipeline_mode<synchronous>, transform_indices = @transform_2, window_bounds = array<i64: 64, 64>}, {pipeline_mode = #tpu.pipeline_mode<synchronous>, transform_indices = @transform_3, window_bounds = array<i64: 64, 50>}, {pipeline_mode = #tpu.pipeline_mode<synchronous>, transform_indices = @transform_4, window_bounds = array<i64: 64, 50>}, {pipeline_mode = #tpu.pipeline_mode<synchronous>, transform_indices = @transform_5, window_bounds = array<i64: 50, 256>}, {transform_indices = @transform_6, window_bounds = array<i64: 128, 256>}]} {
    %c0 = arith.constant 0 : index
    %c0_0 = arith.constant 0 : index
    %0 = vector.load %arg1[%c0, %c0_0] : memref<64x256xf32, #tpu.memory_space<vmem>>, vector<64x256xf32>
    %1 = arith.truncf %0 : vector<64x256xf32> to vector<64x256xbf16>
    %c0_1 = arith.constant 0 : index
    %c0_2 = arith.constant 0 : index
    %2 = vector.load %arg2[%c0_1, %c0_2] : memref<256x50xbf16, #tpu.memory_space<vmem>>, vector<256x50xbf16>
    %cst = arith.constant dense<0.000000e+00> : vector<64x50xf32>
    %3 = tpu.matmul %1, %2, %cst {dimension_numbers = #tpu.dot_dimension_numbers<[1], [0], [0], [1], [0, 0, 1, 1], [], []>} : vector<64x256xbf16>, vector<256x50xbf16>, vector<64x50xf32> -> vector<64x50xf32>
    %c0_3 = arith.constant 0 : index
    %c0_4 = arith.constant 0 : index
    %4 = vector.load %arg3[%c0_3, %c0_4] : memref<64x64xbf16, #tpu.memory_space<vmem>>, vector<64x64xbf16>
    %5 = arith.truncf %3 : vector<64x50xf32> to vector<64x50xbf16>
    %cst_5 = arith.constant dense<0.000000e+00> : vector<64x50xf32>
    %6 = tpu.matmul %4, %5, %cst_5 {dimension_numbers = #tpu.dot_dimension_numbers<[1], [0], [0], [1], [0, 0, 1, 1], [], []>} : vector<64x64xbf16>, vector<64x50xbf16>, vector<64x50xf32> -> vector<64x50xf32>
    %c0_6 = arith.constant 0 : index
    %c0_7 = arith.constant 0 : index
    %7 = vector.load %arg4[%c0_6, %c0_7] : memref<64x50xf32, #tpu.memory_space<vmem>>, vector<64x50xf32>
    %8 = arith.mulf %6, %7 : vector<64x50xf32>
    %c0_8 = arith.constant 0 : index
    %c0_9 = arith.constant 0 : index
    %9 = vector.load %arg5[%c0_8, %c0_9] : memref<64x50xf32, #tpu.memory_space<vmem>>, vector<64x50xf32>
    %10 = arith.addf %8, %9 : vector<64x50xf32>
    %cst_10 = arith.constant 0.000000e+00 : f32
    %11 = vector.broadcast %cst_10 : f32 to vector<64x50xf32>
    %12 = arith.maximumf %10, %11 : vector<64x50xf32>
    %13 = arith.truncf %12 : vector<64x50xf32> to vector<64x50xbf16>
    %c0_11 = arith.constant 0 : index
    %c0_12 = arith.constant 0 : index
    %14 = vector.load %arg6[%c0_11, %c0_12] : memref<50x256xbf16, #tpu.memory_space<vmem>>, vector<50x256xbf16>
    %cst_13 = arith.constant dense<0.000000e+00> : vector<64x256xf32>
    %15 = tpu.matmul %13, %14, %cst_13 {dimension_numbers = #tpu.dot_dimension_numbers<[1], [0], [0], [1], [0, 0, 1, 1], [], []>} : vector<64x50xbf16>, vector<50x256xbf16>, vector<64x256xf32> -> vector<64x256xf32>
    %16 = vector.extract_strided_slice %0 {offsets = [0, 0], sizes = [32, 256], strides = [1, 1]} : vector<64x256xf32> to vector<32x256xf32>
    %c0_14 = arith.constant 0 : index
    %c0_15 = arith.constant 0 : index
    %17 = vector.load %arg7[%c0_14, %c0_15] : memref<128x256xf32, #tpu.memory_space<vmem>>, vector<32x256xf32>
    tpu.vector_store %arg7[%c0_14, %c0_15], %16 {strides = array<i32>} : memref<128x256xf32, #tpu.memory_space<vmem>>, vector<32x256xf32>,
    %18 = vector.extract_strided_slice %15 {offsets = [0, 0], sizes = [32, 256], strides = [1, 1]} : vector<64x256xf32> to vector<32x256xf32>
    %c32 = arith.constant 32 : index
    %c0_16 = arith.constant 0 : index
    %19 = vector.load %arg7[%c32, %c0_16] : memref<128x256xf32, #tpu.memory_space<vmem>>, vector<32x256xf32>
    tpu.vector_store %arg7[%c32, %c0_16], %18 {strides = array<i32>} : memref<128x256xf32, #tpu.memory_space<vmem>>, vector<32x256xf32>,
    %20 = vector.extract_strided_slice %0 {offsets = [32, 0], sizes = [32, 256], strides = [1, 1]} : vector<64x256xf32> to vector<32x256xf32>
    %c64 = arith.constant 64 : index
    %c0_17 = arith.constant 0 : index
    %21 = vector.load %arg7[%c64, %c0_17] : memref<128x256xf32, #tpu.memory_space<vmem>>, vector<32x256xf32>
    tpu.vector_store %arg7[%c64, %c0_17], %20 {strides = array<i32>} : memref<128x256xf32, #tpu.memory_space<vmem>>, vector<32x256xf32>,
    %22 = vector.extract_strided_slice %15 {offsets = [32, 0], sizes = [32, 256], strides = [1, 1]} : vector<64x256xf32> to vector<32x256xf32>
    %c96 = arith.constant 96 : index
    %c0_18 = arith.constant 0 : index
    %23 = vector.load %arg7[%c96, %c0_18] : memref<128x256xf32, #tpu.memory_space<vmem>>, vector<32x256xf32>
    tpu.vector_store %arg7[%c96, %c0_18], %22 {strides = array<i32>} : memref<128x256xf32, #tpu.memory_space<vmem>>, vector<32x256xf32>,
    return
  }
  func.func @transform_0(%arg0: i32) -> (i32, i32) {
    %c0_i32 = arith.constant 0 : i32
    %c0_i32_0 = arith.constant 0 : i32
    return %arg0, %c0_i32 : i32, i32
  }
  func.func @transform_1(%arg0: i32) -> (i32, i32) {
    %c0_i32 = arith.constant 0 : i32
    %c0_i32_0 = arith.constant 0 : i32
    %c0_i32_1 = arith.constant 0 : i32
    return %c0_i32, %c0_i32_0 : i32, i32
  }
  func.func @transform_2(%arg0: i32) -> (i32, i32) {
    %c0_i32 = arith.constant 0 : i32
    %c0_i32_0 = arith.constant 0 : i32
    %c0_i32_1 = arith.constant 0 : i32
    return %c0_i32, %c0_i32_0 : i32, i32
  }
  func.func @transform_3(%arg0: i32) -> (i32, i32) {
    %c0_i32 = arith.constant 0 : i32
    %c0_i32_0 = arith.constant 0 : i32
    %c0_i32_1 = arith.constant 0 : i32
    return %c0_i32, %c0_i32_0 : i32, i32
  }
  func.func @transform_4(%arg0: i32) -> (i32, i32) {
    %c0_i32 = arith.constant 0 : i32
    %c0_i32_0 = arith.constant 0 : i32
    %c0_i32_1 = arith.constant 0 : i32
    return %c0_i32, %c0_i32_0 : i32, i32
  }
  func.func @transform_5(%arg0: i32) -> (i32, i32) {
    %c0_i32 = arith.constant 0 : i32
    %c0_i32_0 = arith.constant 0 : i32
    %c0_i32_1 = arith.constant 0 : i32
    return %c0_i32, %c0_i32_0 : i32, i32
  }
  func.func @transform_6(%arg0: i32) -> (i32, i32) {
    %c0_i32 = arith.constant 0 : i32
    %c0_i32_0 = arith.constant 0 : i32
    return %arg0, %c0_i32 : i32, i32
  }
}

</mosaic_0001>

<llo_original>
// kernel: tpu_custom_call.1
$region0: #{tpu_custom_call.1}
  #allocation0 [shape = 'u32[]', space=smem, size = 0x4, offset = 0x4, fixed_abs, tag = 'smem constant byte address 0x4 - core index']
  #allocation1 [shape = 'u32[72,128]{1,0:T(1,128)}', space=vmem, size = 0x9000, scoped, tag = 'internal scratch']
  %s0 = inlined_call_operand.vmem [shape: f32[64,256], index: 0, kind: input, shape index: {}]
  %s1 = inlined_call_operand.vmem [shape: bf16[256,50], index: 1, kind: input, shape index: {}]
  %s2 = inlined_call_operand.vmem [shape: bf16[64,64], index: 2, kind: input, shape index: {}]
  %s3 = inlined_call_operand.vmem [shape: f32[64,50], index: 3, kind: input, shape index: {}]
  %s4 = inlined_call_operand.vmem [shape: f32[64,50], index: 4, kind: input, shape index: {}]
  %s5 = inlined_call_operand.vmem [shape: bf16[50,256], index: 5, kind: input, shape index: {}]
  %s6 = inlined_call_operand.hbm [shape: f32[128,256], index: 6, kind: output, shape index: {}]
  %s7 = sld [smem:[#allocation0]]
  $region34: #{tpu_custom_call.1} parent=0
    _
  %s9 = ssub.s32 1, %s7
  %s10 = scalar_select 0, %s9, %s7
  $region1: #{tpu_custom_call.1} parent=0
    #allocation2 [shape = 'u8[131072]{0}', space=vmem, size = 0x20000, scoped, tag = 'output window, operand 0, single buffered']
    #allocation3 [shape = 's32[1]{0}', space=sflag, size = 0x4, scoped, tag = 'scoped memory for tpu_custom_call.1']
    %11 = vsyncpa [#allocation3], 0
    // Predicated region
    $region2: #{tpu_custom_call.1} parent=1 // pred_check
      _
    $region3: #{tpu_custom_call.1} parent=1 // pred_check_branch
      %13 = sbr.rel (0) target = $region5
    $region4: #{tpu_custom_call.1} parent=1 // pred_region
      _
    $region5: #{tpu_custom_call.1} parent=1 // pred_fallthru
      _
    // Predicated region
    $region6: #{tpu_custom_call.1} parent=1 // pred_check
      _
    $region7: #{tpu_custom_call.1} parent=1 // pred_check_branch
      %15 = sbr.rel (0) target = $region9
    $region8: #{tpu_custom_call.1} parent=1 // pred_region
      _
    $region9: #{tpu_custom_call.1} parent=1 // pred_fallthru
      _
    // Predicated region
    $region10: #{tpu_custom_call.1} parent=1 // pred_check
      _
    $region11: #{tpu_custom_call.1} parent=1 // pred_check_branch
      %17 = sbr.rel (0) target = $region13
    $region12: #{tpu_custom_call.1} parent=1 // pred_region
      _
    $region13: #{tpu_custom_call.1} parent=1 // pred_fallthru
      _
    // Predicated region
    $region14: #{tpu_custom_call.1} parent=1 // pred_check
      _
    $region15: #{tpu_custom_call.1} parent=1 // pred_check_branch
      %19 = sbr.rel (0) target = $region17
    $region16: #{tpu_custom_call.1} parent=1 // pred_region
      _
    $region17: #{tpu_custom_call.1} parent=1 // pred_fallthru
      _
    // Predicated region
    $region18: #{tpu_custom_call.1} parent=1 // pred_check
      _
    $region19: #{tpu_custom_call.1} parent=1 // pred_check_branch
      %21 = sbr.rel (0) target = $region21
    $region20: #{tpu_custom_call.1} parent=1 // pred_region
      _
    $region21: #{tpu_custom_call.1} parent=1 // pred_fallthru
      _
    // Predicated region
    $region22: #{tpu_custom_call.1} parent=1 // pred_check
      _
    $region23: #{tpu_custom_call.1} parent=1 // pred_check_branch
      %23 = sbr.rel (0) target = $region25
    $region24: #{tpu_custom_call.1} parent=1 // pred_region
      _
    $region25: #{tpu_custom_call.1} parent=1 // pred_fallthru
      _
    %v25 = vld [vmem:[%s0] sm:$0xff]
    %v26 = vld [vmem:[%s0 + $0x8] sm:$0xff]
    %v27 = vld [vmem:[%s0 + $0x10] sm:$0xff]
    %v28 = vld [vmem:[%s0 + $0x18] sm:$0xff]
    %v29 = vld [vmem:[%s0 + $0x20] sm:$0xff]
    %v30 = vld [vmem:[%s0 + $0x28] sm:$0xff]
    %v31 = vld [vmem:[%s0 + $0x30] sm:$0xff]
    %v32 = vld [vmem:[%s0 + $0x38] sm:$0xff]
    %v33 = vld [vmem:[%s0 + $0x40] sm:$0xff]
    %v34 = vld [vmem:[%s0 + $0x48] sm:$0xff]
    %v35 = vld [vmem:[%s0 + $0x50] sm:$0xff]
    %v36 = vld [vmem:[%s0 + $0x58] sm:$0xff]
    %v37 = vld [vmem:[%s0 + $0x60] sm:$0xff]
    %v38 = vld [vmem:[%s0 + $0x68] sm:$0xff]
    %v39 = vld [vmem:[%s0 + $0x70] sm:$0xff]
    %v40 = vld [vmem:[%s0 + $0x78] sm:$0xff]
    %v41 = vpack.c.bf16 %v27, %v25
    %v42 = vpack.c.bf16 %v28, %v26
    %v43 = vpack.c.bf16 %v31, %v29
    %v44 = vpack.c.bf16 %v32, %v30
    %v45 = vpack.c.bf16 %v35, %v33
    %v46 = vpack.c.bf16 %v36, %v34
    %v47 = vpack.c.bf16 %v39, %v37
    %v48 = vpack.c.bf16 %v40, %v38
    %v49 = vld [vmem:[%s1] sm:$0xf]
    %v50 = vld [vmem:[%s1 + $0x4] sm:$0xf]
    %v51 = vld [vmem:[%s1 + $0x8] sm:$0xf]
    %v52 = vld [vmem:[%s1 + $0xc] sm:$0xf]
    %v53 = vld [vmem:[%s1 + $0x10] sm:$0xf]
    %v54 = vld [vmem:[%s1 + $0x14] sm:$0xf]
    %v55 = vld [vmem:[%s1 + $0x18] sm:$0xf]
    %v56 = vld [vmem:[%s1 + $0x1c] sm:$0xf]
    %v57 = vld [vmem:[%s1 + $0x20] sm:$0xf]
    %v58 = vld [vmem:[%s1 + $0x24] sm:$0xf]
    %v59 = vld [vmem:[%s1 + $0x28] sm:$0xf]
    %v60 = vld [vmem:[%s1 + $0x2c] sm:$0xf]
    %v61 = vld [vmem:[%s1 + $0x30] sm:$0xf]
    %v62 = vld [vmem:[%s1 + $0x34] sm:$0xf]
    %v63 = vld [vmem:[%s1 + $0x38] sm:$0xf]
    %v64 = vld [vmem:[%s1 + $0x3c] sm:$0xf]
    %v65 = vld [vmem:[%s1 + $0x40] sm:$0xf]
    %v66 = vld [vmem:[%s1 + $0x44] sm:$0xf]
    %v67 = vld [vmem:[%s1 + $0x48] sm:$0xf]
    %v68 = vld [vmem:[%s1 + $0x4c] sm:$0xf]
    %v69 = vld [vmem:[%s1 + $0x50] sm:$0xf]
    %v70 = vld [vmem:[%s1 + $0x54] sm:$0xf]
    %v71 = vld [vmem:[%s1 + $0x58] sm:$0xf]
    %v72 = vld [vmem:[%s1 + $0x5c] sm:$0xf]
    %v73 = vld [vmem:[%s1 + $0x60] sm:$0xf]
    %v74 = vld [vmem:[%s1 + $0x64] sm:$0xf]
    %v75 = vld [vmem:[%s1 + $0x68] sm:$0xf]
    %v76 = vld [vmem:[%s1 + $0x6c] sm:$0xf]
    %v77 = vld [vmem:[%s1 + $0x70] sm:$0xf]
    %v78 = vld [vmem:[%s1 + $0x74] sm:$0xf]
    %v79 = vld [vmem:[%s1 + $0x78] sm:$0xf]
    %v80 = vld [vmem:[%s1 + $0x7c] sm:$0xf]
    %v113 = vunpack.c.l.b16 %v49
    %v114 = vunpack.c.l.b16 %v50
    %v115 = vunpack.c.l.b16 %v51
    %v116 = vunpack.c.l.b16 %v52
    %v117 = vunpack.c.l.b16 %v53
    %v118 = vunpack.c.l.b16 %v54
    %v119 = vunpack.c.l.b16 %v55
    %v120 = vunpack.c.l.b16 %v56
    %v121 = vunpack.c.l.b16 %v57
    %v122 = vunpack.c.l.b16 %v58
    %v123 = vunpack.c.l.b16 %v59
    %v124 = vunpack.c.l.b16 %v60
    %v125 = vunpack.c.l.b16 %v61
    %v126 = vunpack.c.l.b16 %v62
    %v127 = vunpack.c.l.b16 %v63
    %v128 = vunpack.c.l.b16 %v64
    %v129 = vunpack.c.l.b16 %v65
    %v130 = vunpack.c.l.b16 %v66
    %v131 = vunpack.c.l.b16 %v67
    %v132 = vunpack.c.l.b16 %v68
    %v133 = vunpack.c.l.b16 %v69
    %v134 = vunpack.c.l.b16 %v70
    %v135 = vunpack.c.l.b16 %v71
    %v136 = vunpack.c.l.b16 %v72
    %v137 = vunpack.c.l.b16 %v73
    %v138 = vunpack.c.l.b16 %v74
    %v139 = vunpack.c.l.b16 %v75
    %v140 = vunpack.c.l.b16 %v76
    %v141 = vunpack.c.l.b16 %v77
    %v142 = vunpack.c.l.b16 %v78
    %v143 = vunpack.c.l.b16 %v79
    %v144 = vunpack.c.l.b16 %v80
    %v145 = vpack.c.b16 %v114, %v113
    %v146 = vpack.c.b16 %v116, %v115
    %v147 = vpack.c.b16 %v118, %v117
    %v148 = vpack.c.b16 %v120, %v119
    %v149 = vpack.c.b16 %v122, %v121
    %v150 = vpack.c.b16 %v124, %v123
    %v151 = vpack.c.b16 %v126, %v125
    %v152 = vpack.c.b16 %v128, %v127
    %v153 = vpack.c.b16 %v130, %v129
    %v154 = vpack.c.b16 %v132, %v131
    %v155 = vpack.c.b16 %v134, %v133
    %v156 = vpack.c.b16 %v136, %v135
    %v157 = vpack.c.b16 %v138, %v137
    %v158 = vpack.c.b16 %v140, %v139
    %v159 = vpack.c.b16 %v142, %v141
    %v160 = vpack.c.b16 %v144, %v143
    %177 = vmatpush.bf16.msra.mxu0 %v152
    %178 = vmatpush.bf16.msra.mxu0 %v151
    %179 = vmatpush.bf16.msra.mxu0 %v150
    %180 = vmatpush.bf16.msra.mxu0 %v149
    %181 = vmatpush.bf16.msra.mxu0 %v148
    %182 = vmatpush.bf16.msra.mxu0 %v147
    %183 = vmatpush.bf16.msra.mxu0 %v146
    %184 = vmatpush.bf16.msra.mxu0 %v145
    %185 = vmatmul.bf16.gmra.mxu0 %v41
    %v186 = vpop.f32.mrf.mxu0
    %v187 = vadd.f32 0.0, %v186
    %v188 = vpop.f32.mrf.mxu0
    %v189 = vadd.f32 0.0, %v188
    %190 = vmatmul.bf16.gmra.mxu0 %v43
    %v191 = vpop.f32.mrf.mxu0
    %v192 = vadd.f32 0.0, %v191
    %v193 = vpop.f32.mrf.mxu0
    %v194 = vadd.f32 0.0, %v193
    %195 = vmatmul.bf16.gmra.mxu0 %v45
    %v196 = vpop.f32.mrf.mxu0
    %v197 = vadd.f32 0.0, %v196
    %v198 = vpop.f32.mrf.mxu0
    %v199 = vadd.f32 0.0, %v198
    %200 = vmatmul.bf16.gmra.mxu0 %v47
    %v201 = vpop.f32.mrf.mxu0
    %v202 = vadd.f32 0.0, %v201
    %v203 = vpop.f32.mrf.mxu0
    %v204 = vadd.f32 0.0, %v203
    %205 = vdwg.mxu0
    %206 = vmatpush.bf16.msra.mxu0 %v160
    %207 = vmatpush.bf16.msra.mxu0 %v159
    %208 = vmatpush.bf16.msra.mxu0 %v158
    %209 = vmatpush.bf16.msra.mxu0 %v157
    %210 = vmatpush.bf16.msra.mxu0 %v156
    %211 = vmatpush.bf16.msra.mxu0 %v155
    %212 = vmatpush.bf16.msra.mxu0 %v154
    %213 = vmatpush.bf16.msra.mxu0 %v153
    %214 = vmatmul.bf16.gmra.mxu0 %v42
    %v215 = vpop.f32.mrf.mxu0
    %v216 = vadd.f32 %v187, %v215
    %v217 = vpop.f32.mrf.mxu0
    %v218 = vadd.f32 %v189, %v217
    %219 = vmatmul.bf16.gmra.mxu0 %v44
    %v220 = vpop.f32.mrf.mxu0
    %v221 = vadd.f32 %v192, %v220
    %v222 = vpop.f32.mrf.mxu0
    %v223 = vadd.f32 %v194, %v222
    %224 = vmatmul.bf16.gmra.mxu0 %v46
    %v225 = vpop.f32.mrf.mxu0
    %v226 = vadd.f32 %v197, %v225
    %v227 = vpop.f32.mrf.mxu0
    %v228 = vadd.f32 %v199, %v227
    %229 = vmatmul.bf16.gmra.mxu0 %v48
    %v230 = vpop.f32.mrf.mxu0
    %v231 = vadd.f32 %v202, %v230
    %v232 = vpop.f32.mrf.mxu0
    %v233 = vadd.f32 %v204, %v232
    %234 = vdwg.mxu0
    %v235 = vld [vmem:[%s2] sm:$0xf]
    %v236 = vld [vmem:[%s2 + $0x4] sm:$0xf]
    %v237 = vld [vmem:[%s2 + $0x8] sm:$0xf]
    %v238 = vld [vmem:[%s2 + $0xc] sm:$0xf]
    %v239 = vld [vmem:[%s2 + $0x10] sm:$0xf]
    %v240 = vld [vmem:[%s2 + $0x14] sm:$0xf]
    %v241 = vld [vmem:[%s2 + $0x18] sm:$0xf]
    %v242 = vld [vmem:[%s2 + $0x1c] sm:$0xf]
    %v243 = vpack.c.bf16 %v218, %v216
    %v244 = vpack.c.bf16 %v223, %v221
    %v245 = vpack.c.bf16 %v228, %v226
    %v246 = vpack.c.bf16 %v233, %v231
    %v255 = vunpack.c.l.b16 %v235
    %v256 = vunpack.c.l.b16 %v236
    %v257 = vunpack.c.l.b16 %v237
    %v258 = vunpack.c.l.b16 %v238
    %v259 = vunpack.c.l.b16 %v239
    %v260 = vunpack.c.l.b16 %v240
    %v261 = vunpack.c.l.b16 %v241
    %v262 = vunpack.c.l.b16 %v242
    %v263 = vpack.c.b16 %v256, %v255
    %v264 = vpack.c.b16 %v258, %v257
    %v265 = vpack.c.b16 %v260, %v259
    %v266 = vpack.c.b16 %v262, %v261
    %vm267 = vcmask 523264
    %v269 = vsel %vm267, %v263, 0
    %v272 = vsel %vm267, %v264, 0
    %v275 = vsel %vm267, %v265, 0
    %v278 = vsel %vm267, %v266, 0
    %280 = vmatpush.bf16.msra.mxu0 0
    %281 = vmatpush.bf16.msra.mxu0 0
    %282 = vmatpush.bf16.msra.mxu0 0
    %283 = vmatpush.bf16.msra.mxu0 0
    %284 = vmatpush.bf16.msra.mxu0 %v246
    %285 = vmatpush.bf16.msra.mxu0 %v245
    %286 = vmatpush.bf16.msra.mxu0 %v244
    %287 = vmatpush.bf16.msra.mxu0 %v243
    %288 = vmatmul.bf16.gmra.mxu0 %v269
    %v289 = vpop.f32.mrf.mxu0
    %v290 = vadd.f32 0.0, %v289
    %v291 = vpop.f32.mrf.mxu0
    %v292 = vadd.f32 0.0, %v291
    %293 = vmatmul.bf16.gmra.mxu0 %v272
    %v294 = vpop.f32.mrf.mxu0
    %v295 = vadd.f32 0.0, %v294
    %v296 = vpop.f32.mrf.mxu0
    %v297 = vadd.f32 0.0, %v296
    %298 = vmatmul.bf16.gmra.mxu0 %v275
    %v299 = vpop.f32.mrf.mxu0
    %v300 = vadd.f32 0.0, %v299
    %v301 = vpop.f32.mrf.mxu0
    %v302 = vadd.f32 0.0, %v301
    %303 = vmatmul.bf16.gmra.mxu0 %v278
    %v304 = vpop.f32.mrf.mxu0
    %v305 = vadd.f32 0.0, %v304
    %v306 = vpop.f32.mrf.mxu0
    %v307 = vadd.f32 0.0, %v306
    %308 = vdwg.mxu0
    %v309 = vld [vmem:[%s3] sm:$0xff]
    %v310 = vld [vmem:[%s3 + $0x8] sm:$0xff]
    %v311 = vld [vmem:[%s3 + $0x10] sm:$0xff]
    %v312 = vld [vmem:[%s3 + $0x18] sm:$0xff]
    %v313 = vld [vmem:[%s3 + $0x20] sm:$0xff]
    %v314 = vld [vmem:[%s3 + $0x28] sm:$0xff]
    %v315 = vld [vmem:[%s3 + $0x30] sm:$0xff]
    %v316 = vld [vmem:[%s3 + $0x38] sm:$0xff]
    %v317 = vmul.f32 %v290, %v309
    %v318 = vmul.f32 %v292, %v310
    %v319 = vmul.f32 %v295, %v311
    %v320 = vmul.f32 %v297, %v312
    %v321 = vmul.f32 %v300, %v313
    %v322 = vmul.f32 %v302, %v314
    %v323 = vmul.f32 %v305, %v315
    %v324 = vmul.f32 %v307, %v316
    %v325 = vld [vmem:[%s4] sm:$0xff]
    %v326 = vld [vmem:[%s4 + $0x8] sm:$0xff]
    %v327 = vld [vmem:[%s4 + $0x10] sm:$0xff]
    %v328 = vld [vmem:[%s4 + $0x18] sm:$0xff]
    %v329 = vld [vmem:[%s4 + $0x20] sm:$0xff]
    %v330 = vld [vmem:[%s4 + $0x28] sm:$0xff]
    %v331 = vld [vmem:[%s4 + $0x30] sm:$0xff]
    %v332 = vld [vmem:[%s4 + $0x38] sm:$0xff]
    %v333 = vadd.f32 %v317, %v325
    %v334 = vadd.f32 %v318, %v326
    %v335 = vadd.f32 %v319, %v327
    %v336 = vadd.f32 %v320, %v328
    %v337 = vadd.f32 %v321, %v329
    %v338 = vadd.f32 %v322, %v330
    %v339 = vadd.f32 %v323, %v331
    %v340 = vadd.f32 %v324, %v332
    %v341 = vmax.f32 %v333, 0.0
    %v342 = vmax.f32 %v334, 0.0
    %v343 = vmax.f32 %v335, 0.0
    %v344 = vmax.f32 %v336, 0.0
    %v345 = vmax.f32 %v337, 0.0
    %v346 = vmax.f32 %v338, 0.0
    %v347 = vmax.f32 %v339, 0.0
    %v348 = vmax.f32 %v340, 0.0
    %v349 = vpack.c.bf16 %v342, %v341
    %v350 = vpack.c.bf16 %v344, %v343
    %v351 = vpack.c.bf16 %v346, %v345
    %v352 = vpack.c.bf16 %v348, %v347
    %v353 = vld [vmem:[%s5] sm:$0xff]
    %v354 = vld [vmem:[%s5 + $0x8] sm:$0xff]
    %v355 = vld [vmem:[%s5 + $0x10] sm:$0xff]
    %v356 = vld [vmem:[%s5 + $0x18] sm:$0xff]
    %v357 = vld [vmem:[%s5 + $0x20] sm:$0xff]
    %v358 = vld [vmem:[%s5 + $0x28] sm:$0xff]
    %v359 = vld [vmem:[%s5 + $0x30] sm:$0x11]
    %v367 = vunpack.c.l.b16 %v353
    %v368 = vunpack.c.h.b16 %v353
    %v369 = vunpack.c.l.b16 %v354
    %v370 = vunpack.c.h.b16 %v354
    %v371 = vunpack.c.l.b16 %v355
    %v372 = vunpack.c.h.b16 %v355
    %v373 = vunpack.c.l.b16 %v356
    %v374 = vunpack.c.h.b16 %v356
    %v375 = vunpack.c.l.b16 %v357
    %v376 = vunpack.c.h.b16 %v357
    %v377 = vunpack.c.l.b16 %v358
    %v378 = vunpack.c.h.b16 %v358
    %v379 = vunpack.c.l.b16 %v359
    %v380 = vunpack.c.h.b16 %v359
    %v381 = vpack.c.b16 %v369, %v367
    %v382 = vpack.c.b16 %v370, %v368
    %v383 = vpack.c.b16 %v373, %v371
    %v384 = vpack.c.b16 %v374, %v372
    %v385 = vpack.c.b16 %v377, %v375
    %v386 = vpack.c.b16 %v378, %v376
    %v387 = vpack.c.b16 %v379, %v379
    %v388 = vpack.c.b16 %v380, %v380
    %vm395 = vcmask 408576
    %v397 = vsel %vm395, %v349, 0
    %v400 = vsel %vm395, %v350, 0
    %v403 = vsel %vm395, %v351, 0
    %v406 = vsel %vm395, %v352, 0
    %vm408 = vcmask 1040384
    %v410 = vsel %vm408, %v387, 0
    %v413 = vsel %vm408, %v388, 0
    %415 = vmatpush.bf16.msra.mxu0 0
    %416 = vmatpush.bf16.msra.mxu0 0
    %417 = vmatpush.bf16.msra.mxu0 0
    %418 = vmatpush.bf16.msra.mxu0 0
    %419 = vmatpush.bf16.msra.mxu0 %v410
    %420 = vmatpush.bf16.msra.mxu0 %v385
    %421 = vmatpush.bf16.msra.mxu0 %v383
    %422 = vmatpush.bf16.msra.mxu0 %v381
    %423 = vmatmul.bf16.gmra.mxu0 %v397
    %v424 = vpop.f32.mrf.mxu0
    %v425 = vadd.f32 0.0, %v424
    %v426 = vpop.f32.mrf.mxu0
    %v427 = vadd.f32 0.0, %v426
    %428 = vmatmul.bf16.gmra.mxu0 %v400
    %v429 = vpop.f32.mrf.mxu0
    %v430 = vadd.f32 0.0, %v429
    %v431 = vpop.f32.mrf.mxu0
    %v432 = vadd.f32 0.0, %v431
    %433 = vmatmul.bf16.gmra.mxu0 %v403
    %v434 = vpop.f32.mrf.mxu0
    %v435 = vadd.f32 0.0, %v434
    %v436 = vpop.f32.mrf.mxu0
    %v437 = vadd.f32 0.0, %v436
    %438 = vmatmul.bf16.gmra.mxu0 %v406
    %v439 = vpop.f32.mrf.mxu0
    %v440 = vadd.f32 0.0, %v439
    %v441 = vpop.f32.mrf.mxu0
    %v442 = vadd.f32 0.0, %v441
    %443 = vdwg.mxu0
    %444 = vmatpush.bf16.msra.mxu0 0
    %445 = vmatpush.bf16.msra.mxu0 0
    %446 = vmatpush.bf16.msra.mxu0 0
    %447 = vmatpush.bf16.msra.mxu0 0
    %448 = vmatpush.bf16.msra.mxu0 %v413
    %449 = vmatpush.bf16.msra.mxu0 %v386
    %450 = vmatpush.bf16.msra.mxu0 %v384
    %451 = vmatpush.bf16.msra.mxu0 %v382
    %452 = vmatmul.bf16.gmra.mxu0 %v397
    %v453 = vpop.f32.mrf.mxu0
    %v454 = vadd.f32 0.0, %v453
    %v455 = vpop.f32.mrf.mxu0
    %v456 = vadd.f32 0.0, %v455
    %457 = vmatmul.bf16.gmra.mxu0 %v400
    %v458 = vpop.f32.mrf.mxu0
    %v459 = vadd.f32 0.0, %v458
    %v460 = vpop.f32.mrf.mxu0
    %v461 = vadd.f32 0.0, %v460
    %462 = vmatmul.bf16.gmra.mxu0 %v403
    %v463 = vpop.f32.mrf.mxu0
    %v464 = vadd.f32 0.0, %v463
    %v465 = vpop.f32.mrf.mxu0
    %v466 = vadd.f32 0.0, %v465
    %467 = vmatmul.bf16.gmra.mxu0 %v406
    %v468 = vpop.f32.mrf.mxu0
    %v469 = vadd.f32 0.0, %v468
    %v470 = vpop.f32.mrf.mxu0
    %v471 = vadd.f32 0.0, %v470
    %472 = vdwg.mxu0
    %473 = vst [vmem:[#allocation2] sm:$0xff] %v25
    %474 = vst [vmem:[#allocation2 + $0x8] sm:$0xff] %v26
    %475 = vst [vmem:[#allocation2 + $0x10] sm:$0xff] %v27
    %476 = vst [vmem:[#allocation2 + $0x18] sm:$0xff] %v28
    %477 = vst [vmem:[#allocation2 + $0x20] sm:$0xff] %v29
    %478 = vst [vmem:[#allocation2 + $0x28] sm:$0xff] %v30
    %479 = vst [vmem:[#allocation2 + $0x30] sm:$0xff] %v31
    %480 = vst [vmem:[#allocation2 + $0x38] sm:$0xff] %v32
    %481 = vst [vmem:[#allocation2 + $0x40] sm:$0xff] %v425
    %482 = vst [vmem:[#allocation2 + $0x48] sm:$0xff] %v454
    %483 = vst [vmem:[#allocation2 + $0x50] sm:$0xff] %v427
    %484 = vst [vmem:[#allocation2 + $0x58] sm:$0xff] %v456
    %485 = vst [vmem:[#allocation2 + $0x60] sm:$0xff] %v430
    %486 = vst [vmem:[#allocation2 + $0x68] sm:$0xff] %v459
    %487 = vst [vmem:[#allocation2 + $0x70] sm:$0xff] %v432
    %488 = vst [vmem:[#allocation2 + $0x78] sm:$0xff] %v461
    %489 = vst [vmem:[#allocation2 + $0x80] sm:$0xff] %v33
    %490 = vst [vmem:[#allocation2 + $0x88] sm:$0xff] %v34
    %491 = vst [vmem:[#allocation2 + $0x90] sm:$0xff] %v35
    %492 = vst [vmem:[#allocation2 + $0x98] sm:$0xff] %v36
    %493 = vst [vmem:[#allocation2 + $0xa0] sm:$0xff] %v37
    %494 = vst [vmem:[#allocation2 + $0xa8] sm:$0xff] %v38
    %495 = vst [vmem:[#allocation2 + $0xb0] sm:$0xff] %v39
    %496 = vst [vmem:[#allocation2 + $0xb8] sm:$0xff] %v40
    %497 = vst [vmem:[#allocation2 + $0xc0] sm:$0xff] %v435
    %498 = vst [vmem:[#allocation2 + $0xc8] sm:$0xff] %v464
    %499 = vst [vmem:[#allocation2 + $0xd0] sm:$0xff] %v437
    %500 = vst [vmem:[#allocation2 + $0xd8] sm:$0xff] %v466
    %501 = vst [vmem:[#allocation2 + $0xe0] sm:$0xff] %v440
    %502 = vst [vmem:[#allocation2 + $0xe8] sm:$0xff] %v469
    %503 = vst [vmem:[#allocation2 + $0xf0] sm:$0xff] %v442
    %504 = vst [vmem:[#allocation2 + $0xf8] sm:$0xff] %v471
    // Predicated region
    $region26: #{tpu_custom_call.1} parent=1 // pred_check
      _
    $region27: #{tpu_custom_call.1} parent=1 // pred_check_branch
      %506 = sbr.rel (0) target = $region29
    $region28: #{tpu_custom_call.1} parent=1 // pred_region
      %508 = vsyncadd [#allocation3], 0
      %s509 = sshll.u32 [#allocation2], 4
      %s510 = int_to_ptr.vmem [resolvable:$true] %s509
      %s511 = sshll.u32 %s6, 4
      %s512 = int_to_ptr.hbm [resolvable:$true] %s511
      %517 = dma.vmem_to_hbm [thread:$0]  %s510, 4096, %s512, [#allocation3], 256, 256, 16
    $region29: #{tpu_custom_call.1} parent=1 // pred_fallthru
      _
    // Predicated region
    $region30: #{tpu_custom_call.1} parent=1 // pred_check
      _
    $region31: #{tpu_custom_call.1} parent=1 // pred_check_branch
      %519 = sbr.rel (0) target = $region33
    $region32: #{tpu_custom_call.1} parent=1 // pred_region
      %521 = dma.done [#allocation3], 4096
    $region33: #{tpu_custom_call.1} parent=1 // pred_fallthru
      _
    %522 = vsyncpa [#allocation3], 1

</llo_original>
